<compile_context>
chip_gen: v6e
topology: v6e:2x2x1
jax: 0.10.0
libtpu: 0.0.40
codegen_flags: <defaults>
</compile_context>

<pallas_src>
import jax
import jax.numpy as jnp
from jax.experimental import pallas as pl
from jax.experimental.pallas import tpu as pltpu


def _round_up(n: int, m: int) -> int:
    return (n + m - 1) // m * m


_VMEM_CAP = None


def _vmem_capacity_bytes() -> int:
    """Per-core VMEM capacity; conservative 64 MiB (v7x) fallback."""
    global _VMEM_CAP
    if _VMEM_CAP is None:
        try:
            _VMEM_CAP = int(pltpu.get_tpu_info().vmem_capacity_bytes)
        except Exception:
            _VMEM_CAP = 64 << 20
    return _VMEM_CAP


def _pick_bm(B: int, Dp: int, vmem_budget: int) -> int:
    """Largest batch tile that fits the VMEM budget; >=2 grid steps if possible."""
    weight_bytes = Dp * Dp * 2          # bf16, resident, single-buffered
    bias_bytes = 8 * Dp * 4             # (1, Dp) f32, padded to 8 sublanes
    headroom = 2 << 20                  # Mosaic internal scratch / semaphores
    avail = vmem_budget - weight_bytes - bias_bytes - headroom
    per_row = 4 * 2 * Dp * 4            # x + out, f32, double-buffered
    bm = max(avail // per_row, 8) if avail > 0 else 8
    bm = min(bm, 4096)                  # diminishing returns past a few MiB/tile

    if bm >= B:
        if B >= 16:
            # Force >= 2 grid steps so both v7x TensorCores get work.
            bm = _round_up(-(-B // 2), 8)
        else:
            bm = B                      # one block == full batch dim (always valid)
    else:
        # Multiple of 256 when large (MXU/DMA friendly), else multiple of 8.
        bm = (bm // 256) * 256 if bm >= 256 else (bm // 8) * 8
        bm = max(bm, 8)
    return int(bm)


def res_layer_kernel(x_ref, wt_ref, b_ref, o_ref):
    """One batch tile of relu(x + x @ W.T + b).

    x_ref  : (bm, Dp) f32   input tile (marches over batch)
    wt_ref : (Dp, Dp) bf16  pre-transposed weight W.T, resident, single-buffered
    b_ref  : (1,  Dp) f32   bias row, resident, single-buffered
    o_ref  : (bm, Dp) f32   output tile
    """
    x = x_ref[...]
    # Plain (M,K)x(K,N) MXU matmul -- weight was transposed once at load time,
    # so no in-kernel transpose is ever needed. bf16 operands, f32 accumulation.
    y = jnp.dot(x.astype(jnp.bfloat16), wt_ref[...],
                preferred_element_type=jnp.float32)
    # Bias broadcast + residual add + ReLU in f32 on the VPU.
    o_ref[...] = jnp.maximum(x + y + b_ref[...], 0.0)


def prepare_res_layer_params(w, b):
    """One-time (load-time) weight prep: transpose, pad to 128 lanes, bf16 cast.

    w: (D, D) PyTorch nn.Linear weight layout, b: (D,).
    Returns (w_t, b_row): (Dp, Dp) bf16 pre-transposed weight, (1, Dp) f32 bias.
    """
    D = w.shape[0]
    Dp = _round_up(D, 128)
    w_t = jnp.asarray(w, jnp.float32).T           # kernel computes x @ w_t == x @ W.T
    if Dp != D:
        w_t = jnp.pad(w_t, ((0, Dp - D), (0, Dp - D)))
    w_t = w_t.astype(jnp.bfloat16)                # halves weight HBM/VMEM traffic
    b_row = jnp.asarray(b, jnp.float32)
    if Dp != D:
        b_row = jnp.pad(b_row, (0, Dp - D))
    return w_t, b_row.reshape(1, Dp)


@jax.jit
def res_layer(x, w_t, b_row):
    """relu(x + x @ W.T + b) given pre-prepared (w_t, b_row)."""
    B, D = x.shape
    Dp = w_t.shape[0]

    # Feature pad only when required (D % 128 != 0); no batch pad, no batch slice.
    x_p = x.astype(jnp.float32)
    if Dp != D:
        x_p = jnp.pad(x_p, ((0, 0), (0, Dp - D)))

    vmem_budget = int(0.85 * _vmem_capacity_bytes())   # leave headroom on v7x's 64 MiB
    bm = _pick_bm(B, Dp, vmem_budget)
    grid = (pl.cdiv(B, bm),)

    # Real VMEM accounting: resident bf16 weight + bias, double-buffered x/out.
    vmem_need = Dp * Dp * 2 + 8 * Dp * 4 + 4 * bm * Dp * 4 + (2 << 20)
    vmem_limit = int(min(max(vmem_need, 16 << 20), vmem_budget))

    cost = pl.CostEstimate(
        flops=2 * B * Dp * Dp + 3 * B * Dp,
        transcendentals=0,
        bytes_accessed=2 * B * Dp * 4 + Dp * Dp * 2 + Dp * 4,
    )

    out_p = pl.pallas_call(
        res_layer_kernel,
        out_shape=jax.ShapeDtypeStruct((B, Dp), jnp.float32),
        grid_spec=pltpu.PrefetchScalarGridSpec(
            num_scalar_prefetch=0,
            grid=grid,
            in_specs=[
                # x tile marches over batch (double-buffered by default);
                # ragged last tile handled by Pallas boundary masking.
                pl.BlockSpec((bm, Dp), lambda i: (i, 0)),
                # Constant blocks: single-buffer, index_map never changes.
                pl.BlockSpec((Dp, Dp), lambda i: (0, 0),
                             pipeline_mode=pl.Buffered(1)),
                pl.BlockSpec((1, Dp), lambda i: (0, 0),
                             pipeline_mode=pl.Buffered(1)),
            ],
            out_specs=pl.BlockSpec((bm, Dp), lambda i: (i, 0)),
        ),
        compiler_params=pltpu.CompilerParams(
            dimension_semantics=("parallel",),
            vmem_limit_bytes=vmem_limit,
        ),
        cost_estimate=cost,
    )(x_p, w_t, b_row)

    return out_p[:, :D] if Dp != D else out_p


def res_layer_ref(x, w, b):
    """Pure-JAX (f32) reference of the PyTorch forward."""
    out = x @ w.T + b
    return jnp.maximum(x + out, 0.0)


if __name__ == "__main__":
    key = jax.random.PRNGKey(0)
    kx, kw, kb, kx2, kx3 = jax.random.split(key, 5)

    D = 32                                   # channel_in
    bound = 1.0 / jnp.sqrt(D)
    w = jax.random.uniform(kw, (D, D), minval=-bound, maxval=bound,
                           dtype=jnp.float32)
    b = jax.random.uniform(kb, (D,), minval=-bound, maxval=bound,
                           dtype=jnp.float32)

    # One-time (load-time) weight/bias preparation -- outside the forward path.
    w_t, b_row = prepare_res_layer_params(w, b)

    def check(k, B):
        x = jax.random.normal(k, (B, D), dtype=jnp.float32)
        out = jax.block_until_ready(res_layer(x, w_t, b_row))
        ref = res_layer_ref(x, w, b)
        assert out.shape == (B, D)
        # bf16 matmul (f32 accumulate) vs f32 reference -> relaxed tolerance.
        assert jnp.allclose(out, ref, atol=2e-2, rtol=2e-2), f"mismatch (B={B})"

    check(kx, 16)    # two grid steps (keeps both v7x TensorCores busy)
    check(kx2, 20)   # ragged last batch tile (20 not a multiple of the 16-row tile)
    check(kx3, 10)   # whole-batch single block with B % 8 != 0

    print("KERNEL_OK")
</pallas_src>

<mosaic_0001>
module attributes {stable_mosaic.version = 11 : i64} {
  func.func @res_layer_kernel(%arg0: i32, %arg1: memref<8x128xf32, #tpu.memory_space<vmem>>, %arg2: memref<128x128xbf16, #tpu.memory_space<vmem>>, %arg3: memref<1x128xf32, #tpu.memory_space<vmem>>, %arg4: memref<8x128xf32, #tpu.memory_space<vmem>>) attributes {dimension_semantics = [#tpu.dimension_semantics<parallel>], iteration_bounds = array<i64: 2>, scalar_prefetch = 0 : i64, scratch_operands = 0 : i64, tpu.core_type = #tpu.core_type<tc>, window_params = [{transform_indices = @transform_0, window_bounds = array<i64: 8, 128>}, {pipeline_mode = #tpu.pipeline_mode<synchronous>, transform_indices = @transform_1, window_bounds = array<i64: 128, 128>}, {pipeline_mode = #tpu.pipeline_mode<synchronous>, transform_indices = @transform_2, window_bounds = array<i64: 1, 128>}, {transform_indices = @transform_3, window_bounds = array<i64: 8, 128>}]} {
    %c0 = arith.constant 0 : index
    %c0_0 = arith.constant 0 : index
    %0 = vector.load %arg1[%c0, %c0_0] : memref<8x128xf32, #tpu.memory_space<vmem>>, vector<8x128xf32>
    %1 = arith.truncf %0 : vector<8x128xf32> to vector<8x128xbf16>
    %c0_1 = arith.constant 0 : index
    %c0_2 = arith.constant 0 : index
    %2 = vector.load %arg2[%c0_1, %c0_2] : memref<128x128xbf16, #tpu.memory_space<vmem>>, vector<128x128xbf16>
    %cst = arith.constant dense<0.000000e+00> : vector<8x128xf32>
    %3 = tpu.matmul %1, %2, %cst {dimension_numbers = #tpu.dot_dimension_numbers<[1], [0], [0], [1], [0, 0, 1, 1], [], []>} : vector<8x128xbf16>, vector<128x128xbf16>, vector<8x128xf32> -> vector<8x128xf32>
    %4 = arith.addf %0, %3 : vector<8x128xf32>
    %c0_3 = arith.constant 0 : index
    %c0_4 = arith.constant 0 : index
    %5 = vector.load %arg3[%c0_3, %c0_4] : memref<1x128xf32, #tpu.memory_space<vmem>>, vector<1x128xf32>
    %6 = vector.broadcast %5 : vector<1x128xf32> to vector<8x128xf32>
    %7 = arith.addf %4, %6 : vector<8x128xf32>
    %cst_5 = arith.constant 0.000000e+00 : f32
    %8 = vector.broadcast %cst_5 : f32 to vector<8x128xf32>
    %9 = arith.maximumf %7, %8 : vector<8x128xf32>
    %c0_6 = arith.constant 0 : index
    %c0_7 = arith.constant 0 : index
    %10 = vector.load %arg4[%c0_6, %c0_7] : memref<8x128xf32, #tpu.memory_space<vmem>>, vector<8x128xf32>
    tpu.vector_store %arg4[%c0_6, %c0_7], %9 {strides = array<i32>} : memref<8x128xf32, #tpu.memory_space<vmem>>, vector<8x128xf32>,
    return
  }
  func.func @transform_0(%arg0: i32) -> (i32, i32) {
    %c0_i32 = arith.constant 0 : i32
    %c0_i32_0 = arith.constant 0 : i32
    return %arg0, %c0_i32 : i32, i32
  }
  func.func @transform_1(%arg0: i32) -> (i32, i32) {
    %c0_i32 = arith.constant 0 : i32
    %c0_i32_0 = arith.constant 0 : i32
    %c0_i32_1 = arith.constant 0 : i32
    return %c0_i32, %c0_i32_0 : i32, i32
  }
  func.func @transform_2(%arg0: i32) -> (i32, i32) {
    %c0_i32 = arith.constant 0 : i32
    %c0_i32_0 = arith.constant 0 : i32
    %c0_i32_1 = arith.constant 0 : i32
    return %c0_i32, %c0_i32_0 : i32, i32
  }
  func.func @transform_3(%arg0: i32) -> (i32, i32) {
    %c0_i32 = arith.constant 0 : i32
    %c0_i32_0 = arith.constant 0 : i32
    return %arg0, %c0_i32 : i32, i32
  }
}

</mosaic_0001>

<llo_original>
// kernel: res_layer.1
$region0: #{res_layer.1}
  #allocation0 [shape = 'u32[]', space=smem, size = 0x4, offset = 0x4, fixed_abs, tag = 'smem constant byte address 0x4 - core index']
  #allocation1 [shape = 'u32[144,128]{1,0:T(1,128)}', space=vmem, size = 0x12000, scoped, tag = 'internal scratch']
  %s0 = inlined_call_operand.vmem [shape: f32[16,128], index: 0, kind: input, shape index: {}]
  %s1 = inlined_call_operand.hbm [shape: bf16[128,128], index: 1, kind: input, shape index: {}]
  %s2 = inlined_call_operand.vmem [shape: f32[1,128], index: 2, kind: input, shape index: {}]
  %s3 = inlined_call_operand.hbm [shape: f32[16,128], index: 3, kind: output, shape index: {}]
  %s4 = sld [smem:[#allocation0]]
  $region49: #{res_layer.1} parent=0
    _
  %s6 = ssub.s32 1, %s4
  %s7 = scalar_select 0, %s6, %s4
  $region1: #{res_layer.1} parent=0
    #allocation2 [shape = 'u8[32768]{0}', space=vmem, size = 0x8000, scoped, tag = 'input window, operand 1, single buffered']
    #allocation3 [shape = 's32[2]{0}', space=sflag, size = 0x8, scoped, tag = 'scoped memory for res_layer.1']
    #allocation4 [shape = 's32[2]{0}', space=sflag, size = 0x8, scoped, tag = 'scoped memory for res_layer.1']
    #allocation5 [shape = 'u8[8192]{0}', space=vmem, size = 0x2000, scoped, tag = 'output window, operand 0']
    %8 = vsyncpa [#allocation3], 0
    %9 = vsyncpa [#allocation4], 0
    %s10 = scalar_lea.sflag [#allocation4], 1
    %11 = vsyncpa %s10, 0
    loop: start=0, step=1, limit=4
    $region2: #{res_layer.1} parent=1 // loop_pre_header
      _
    $region3: #{res_layer.1} parent=1 // loop_header
      %s13 = sphi 0, %s17
      %p14 = scmp.ge.s32.totalorder %s13, 4
      %s23 = sphi 0, %s25
      %s26 = sphi 0, %s23
      %s27 = sphi 0, %s26
      %s43 = sphi 0, %s27
      %s47 = sphi 0, %s47
      %s49 = sphi 0, %s47
      %s50 = sphi 0, %s49
      %s64 = sphi 0, %s50
      %s68 = sphi 0, %s68
      %s70 = sphi 0, %s68
      %s71 = sphi 0, %s70
      %s85 = sphi 0, %s71
      %s91 = sphi 0, %s93
      %s94 = sphi 0, %s91
      %s95 = sphi 0, %s94
      %s111 = sphi 0, %s95
    $region4: #{res_layer.1} parent=1 // loop_header_branch
      %16 = sbr.rel (%p14) target = $region8
    $region5: #{res_layer.1} parent=1 // loop_body
      %s18 = ssub.s32 %s13, 1
      %s19 = ssub.s32 %s13, 2
      %s20 = sadd.s32 %s13, 1
      %s21 = ssub.s32 %s13, %s20
      %p22 = scmp.eq.s32.totalorder %s21, 0
      %s24 = sadd.s32 %s23, 1
      %s25 = scalar_select %p22, %s23, %s24
      %p28 = pneg %p22
      %p29 = scmp.eq.s32.totalorder %s13, 1
      %p30 = por %p28, %p29
      %p31 = scmp.ne.s32.totalorder %s23, %s26
      %p32 = scmp.eq.s32.totalorder %s13, 0
      %p33 = por %p31, %p32
      %p34 = scmp.ne.s32.totalorder %s23, %s26
      %p35 = scmp.eq.s32.totalorder %s18, 1
      %p36 = por %p34, %p35
      %p37 = scmp.ne.s32.totalorder %s26, %s27
      %p38 = scmp.eq.s32.totalorder %s18, 0
      %p39 = por %p37, %p38
      %p40 = scmp.ne.s32.totalorder %s26, %s27
      %p41 = scmp.eq.s32.totalorder %s19, 1
      %p42 = por %p40, %p41
      %p44 = scmp.ne.s32.totalorder %s27, %s43
      %p45 = scmp.eq.s32.totalorder %s19, 0
      %p46 = por %p44, %p45
      %s48 = sadd.s32 %s47, 1
      %p51 = scmp.eq.s32.totalorder %s13, 1
      %p52 = scmp.ne.s32.totalorder %s47, %s49
      %p53 = scmp.eq.s32.totalorder %s13, 0
      %p54 = por %p52, %p53
      %p55 = scmp.ne.s32.totalorder %s47, %s49
      %p56 = scmp.eq.s32.totalorder %s18, 1
      %p57 = por %p55, %p56
      %p58 = scmp.ne.s32.totalorder %s49, %s50
      %p59 = scmp.eq.s32.totalorder %s18, 0
      %p60 = por %p58, %p59
      %p61 = scmp.ne.s32.totalorder %s49, %s50
      %p62 = scmp.eq.s32.totalorder %s19, 1
      %p63 = por %p61, %p62
      %p65 = scmp.ne.s32.totalorder %s50, %s64
      %p66 = scmp.eq.s32.totalorder %s19, 0
      %p67 = por %p65, %p66
      %s69 = sadd.s32 %s68, 1
      %p72 = scmp.eq.s32.totalorder %s13, 1
      %p73 = scmp.ne.s32.totalorder %s68, %s70
      %p74 = scmp.eq.s32.totalorder %s13, 0
      %p75 = por %p73, %p74
      %p76 = scmp.ne.s32.totalorder %s68, %s70
      %p77 = scmp.eq.s32.totalorder %s18, 1
      %p78 = por %p76, %p77
      %p79 = scmp.ne.s32.totalorder %s70, %s71
      %p80 = scmp.eq.s32.totalorder %s18, 0
      %p81 = por %p79, %p80
      %p82 = scmp.ne.s32.totalorder %s70, %s71
      %p83 = scmp.eq.s32.totalorder %s19, 1
      %p84 = por %p82, %p83
      %p86 = scmp.ne.s32.totalorder %s71, %s85
      %p87 = scmp.eq.s32.totalorder %s19, 0
      %p88 = por %p86, %p87
      %s89 = ssub.s32 %s13, %s20
      %p90 = scmp.eq.s32.totalorder %s89, 0
      %s92 = sadd.s32 %s91, 1
      %s93 = scalar_select %p90, %s91, %s92
      %p96 = pneg %p90
      %p97 = scmp.eq.s32.totalorder %s13, 1
      %p98 = por %p96, %p97
      %p99 = scmp.ne.s32.totalorder %s91, %s94
      %p100 = scmp.eq.s32.totalorder %s13, 0
      %p101 = por %p99, %p100
      %p102 = scmp.ne.s32.totalorder %s91, %s94
      %p103 = scmp.eq.s32.totalorder %s18, 1
      %p104 = por %p102, %p103
      %p105 = scmp.ne.s32.totalorder %s94, %s95
      %p106 = scmp.eq.s32.totalorder %s18, 0
      %p107 = por %p105, %p106
      %p108 = scmp.ne.s32.totalorder %s94, %s95
      %p109 = scmp.eq.s32.totalorder %s19, 1
      %p110 = por %p108, %p109
      %p112 = scmp.ne.s32.totalorder %s95, %s111
      %p113 = scmp.eq.s32.totalorder %s19, 0
      %p114 = por %p112, %p113
      %p115 = scmp.le.s32.totalorder 1, %s13
      %p116 = scmp.lt.s32.totalorder %s13, 3
      %p117 = pnand %p115, %p116
      %p118 = pneg %p117
      // Predicated region
      $region9: #{res_layer.1} parent=5 // pred_check
        _
      $region10: #{res_layer.1} parent=5 // pred_check_branch
        %120 = sbr.rel (%p117) target = $region12
      $region11: #{res_layer.1} parent=5 // pred_region
        %s121 = ssub.s32 %s13, 1
        // Predicated region
        $region13: #{res_layer.1} parent=11 // pred_check
          %p122 = pneg %p60
        $region14: #{res_layer.1} parent=11 // pred_check_branch
          %124 = sbr.rel (%p122) target = $region16
        $region15: #{res_layer.1} parent=11 // pred_region
          %s126 = ssub.s32 1024, 1024
          %127 = vsyncadd [#allocation3], %s126
          %s128 = sshll.u32 [#allocation2], 4
          %s129 = int_to_ptr.vmem [resolvable:$true] %s128
          %134 = dma.hbm_to_vmem [thread:$0]  %s1, 1024, %s129, [#allocation3], 64, 64, 4
        $region16: #{res_layer.1} parent=11 // pred_fallthru
          _
        // Predicated region
        $region17: #{res_layer.1} parent=11 // pred_check
          %p135 = pneg %p81
        $region18: #{res_layer.1} parent=11 // pred_check_branch
          %137 = sbr.rel (%p135) target = $region20
        $region19: #{res_layer.1} parent=11 // pred_region
          _
        $region20: #{res_layer.1} parent=11 // pred_fallthru
          _
      $region12: #{res_layer.1} parent=5 // pred_fallthru
        _
      %p138 = scmp.lt.s32.totalorder %s13, 2
      // Predicated region
      $region21: #{res_layer.1} parent=5 // pred_check
        %p139 = pneg %p138
      $region22: #{res_layer.1} parent=5 // pred_check_branch
        %141 = sbr.rel (%p139) target = $region24
      $region23: #{res_layer.1} parent=5 // pred_region
        // Predicated region
        $region25: #{res_layer.1} parent=23 // pred_check
          %p142 = pneg %p33
        $region26: #{res_layer.1} parent=23 // pred_check_branch
          %144 = sbr.rel (%p142) target = $region28
        $region27: #{res_layer.1} parent=23 // pred_region
          %p145 = scmp.lt.s32.totalorder %s13, 1
          %s146 = scalar_select %p145, %s13, 1
          %s147 = smul.addr %s146, 8
          %s148 = scalar_lea.vmem %s0, %s147
        $region28: #{res_layer.1} parent=23 // pred_fallthru
          _
      $region24: #{res_layer.1} parent=5 // pred_fallthru
        _
      %p149 = scmp.le.s32.totalorder 1, %s13
      %p150 = scmp.lt.s32.totalorder %s13, 3
      %p151 = pnand %p149, %p150
      %p152 = pneg %p151
      // Predicated region
      $region29: #{res_layer.1} parent=5 // pred_check
        _
      $region30: #{res_layer.1} parent=5 // pred_check_branch
        %154 = sbr.rel (%p151) target = $region32
      $region31: #{res_layer.1} parent=5 // pred_region
        %s155 = ssub.s32 %s13, 1
        // Predicated region
        $region33: #{res_layer.1} parent=31 // pred_check
          %p156 = pneg %p60
        $region34: #{res_layer.1} parent=31 // pred_check_branch
          %158 = sbr.rel (%p156) target = $region36
        $region35: #{res_layer.1} parent=31 // pred_region
          %159 = dma.done [#allocation3], 1024
        $region36: #{res_layer.1} parent=31 // pred_fallthru
          _
        %p160 = scmp.lt.s32.totalorder %s18, 1
        %s161 = scalar_select %p160, %s18, 1
        %s162 = smul.addr %s161, 8
        %s163 = scalar_lea.vmem %s0, %s162
        %p164 = pneg %p39
        %p165 = pneg %p36
        %p166 = pneg %p60
        %p167 = pneg %p57
        %p168 = pneg %p81
        %p169 = pneg %p78
        %p170 = pneg %p107
        %p171 = pneg %p104
        %s172 = sand.u32 %s94, 1
        %s173 = scalar_lea.sflag [#allocation4], %s172
        %s174 = sand.u32 %s94, 1
        %s175 = smul.addr %s174, 8
        %s176 = scalar_lea.vmem [#allocation5], %s175
        %p177 = scmp.lt.s32.totalorder %s18, 1
        %s178 = scalar_select %p177, %s18, 1
        %s179 = smul.addr %s178, 8
        %s180 = scalar_lea.vmem %s0, %s179
        %v182 = vld [vmem:[%s180] sm:$0xff]
        %v183 = vpack.c.bf16 %v182, %v182
        %v184 = vld [vmem:[#allocation2] sm:$0xf]
        %v185 = vld [vmem:[#allocation2 + $0x4] sm:$0xf]
        %v186 = vld [vmem:[#allocation2 + $0x8] sm:$0xf]
        %v187 = vld [vmem:[#allocation2 + $0xc] sm:$0xf]
        %v188 = vld [vmem:[#allocation2 + $0x10] sm:$0xf]
        %v189 = vld [vmem:[#allocation2 + $0x14] sm:$0xf]
        %v190 = vld [vmem:[#allocation2 + $0x18] sm:$0xf]
        %v191 = vld [vmem:[#allocation2 + $0x1c] sm:$0xf]
        %v192 = vld [vmem:[#allocation2 + $0x20] sm:$0xf]
        %v193 = vld [vmem:[#allocation2 + $0x24] sm:$0xf]
        %v194 = vld [vmem:[#allocation2 + $0x28] sm:$0xf]
        %v195 = vld [vmem:[#allocation2 + $0x2c] sm:$0xf]
        %v196 = vld [vmem:[#allocation2 + $0x30] sm:$0xf]
        %v197 = vld [vmem:[#allocation2 + $0x34] sm:$0xf]
        %v198 = vld [vmem:[#allocation2 + $0x38] sm:$0xf]
        %v199 = vld [vmem:[#allocation2 + $0x3c] sm:$0xf]
        %v216 = vunpack.c.l.b16 %v184
        %v217 = vunpack.c.l.b16 %v185
        %v218 = vunpack.c.l.b16 %v186
        %v219 = vunpack.c.l.b16 %v187
        %v220 = vunpack.c.l.b16 %v188
        %v221 = vunpack.c.l.b16 %v189
        %v222 = vunpack.c.l.b16 %v190
        %v223 = vunpack.c.l.b16 %v191
        %v224 = vunpack.c.l.b16 %v192
        %v225 = vunpack.c.l.b16 %v193
        %v226 = vunpack.c.l.b16 %v194
        %v227 = vunpack.c.l.b16 %v195
        %v228 = vunpack.c.l.b16 %v196
        %v229 = vunpack.c.l.b16 %v197
        %v230 = vunpack.c.l.b16 %v198
        %v231 = vunpack.c.l.b16 %v199
        %v232 = vpack.c.b16 %v217, %v216
        %v233 = vpack.c.b16 %v219, %v218
        %v234 = vpack.c.b16 %v221, %v220
        %v235 = vpack.c.b16 %v223, %v222
        %v236 = vpack.c.b16 %v225, %v224
        %v237 = vpack.c.b16 %v227, %v226
        %v238 = vpack.c.b16 %v229, %v228
        %v239 = vpack.c.b16 %v231, %v230
        %248 = vmatprep.subr.bf16.mxu0 0
        %249 = vmatpush1.bf16.msra.mxu0 %v239
        %250 = vmatprep.subr.bf16.mxu0 0
        %251 = vmatpush1.bf16.msra.mxu0 %v238
        %252 = vmatprep.subr.bf16.mxu0 0
        %253 = vmatpush1.bf16.msra.mxu0 %v237
        %254 = vmatprep.subr.bf16.mxu0 0
        %255 = vmatpush1.bf16.msra.mxu0 %v236
        %256 = vmatprep.subr.bf16.mxu0 0
        %257 = vmatpush1.bf16.msra.mxu0 %v235
        %258 = vmatprep.subr.bf16.mxu0 0
        %259 = vmatpush1.bf16.msra.mxu0 %v234
        %260 = vmatprep.subr.bf16.mxu0 0
        %261 = vmatpush1.bf16.msra.mxu0 %v233
        %262 = vmatprep.subr.bf16.mxu0 0
        %263 = vmatpush1.bf16.msra.mxu0 %v232
        %264 = vmatprep.subr.bf16.mxu0 0
        %265 = vmatpush2.bf16.msra.mxu0 0
        %266 = vmatprep.subr.bf16.mxu0 0
        %267 = vmatpush2.bf16.msra.mxu0 0
        %268 = vmatprep.subr.bf16.mxu0 0
        %269 = vmatpush2.bf16.msra.mxu0 0
        %270 = vmatprep.subr.bf16.mxu0 0
        %271 = vmatpush2.bf16.msra.mxu0 0
        %272 = vmatprep.subr.bf16.mxu0 0
        %273 = vmatpush2.bf16.msra.mxu0 0
        %274 = vmatprep.subr.bf16.mxu0 0
        %275 = vmatpush2.bf16.msra.mxu0 0
        %276 = vmatprep.subr.bf16.mxu0 0
        %277 = vmatpush2.bf16.msra.mxu0 0
        %278 = vmatprep.subr.bf16.mxu0 0
        %279 = vmatpush2.bf16.msra.mxu0 0
        %280 = vmatprep.mubr.bf16.mxu0 0
        %281 = vmatmul.mubr.bf16.gmra.mxu0 %v183
        %v282 = vpop.f32.mrf.mxu0
        %v283 = vadd.f32 0.0, %v282
        %v284 = vpop.f32.mrf.mxu0
        %v285 = vpop.f32.mrf.mxu0
        %v286 = vpop.f32.mrf.mxu0
        %287 = vdwg.mxu0
        %v288 = vadd.f32 %v182, %v283
        %v289 = vld [vmem:[%s2] sm:$0x1]
        %v291 = vlaneseq
        %v292 = vshrl.u32 %v291, 7
        %v293 = vsub.s32 0, %v292
        %v294 = vrot.slane %v289, %v293
        %v296 = vadd.f32 %v288, %v294
        %v297 = vmax.f32 %v296, 0.0
        %298 = vst [vmem:[%s176] sm:$0xff] %v297
        %s299 = sand.u32 %s94, 1
        %s300 = scalar_lea.sflag [#allocation4], %s299
        %s301 = sand.u32 %s94, 1
        %s302 = smul.addr %s301, 8
        %s303 = scalar_lea.vmem [#allocation5], %s302
        // Predicated region
        $region37: #{res_layer.1} parent=31 // pred_check
          %p304 = pneg %p104
        $region38: #{res_layer.1} parent=31 // pred_check_branch
          %306 = sbr.rel (%p304) target = $region40
        $region39: #{res_layer.1} parent=31 // pred_region
          %s308 = ssub.s32 128, 128
          %309 = vsyncadd %s300, %s308
          %s310 = smul.addr %s18, 128
          %s311 = scalar_lea.hbm %s3, %s310
          %s313 = sshll.u32 %s303, 4
          %s314 = int_to_ptr.vmem [resolvable:$true] %s313
          %316 = dma.vmem_to_hbm [thread:$0]  %s314, 128, %s311, %s300
        $region40: #{res_layer.1} parent=31 // pred_fallthru
          _
      $region32: #{res_layer.1} parent=5 // pred_fallthru
        _
      %p317 = scmp.le.s32.totalorder 2, %s13
      // Predicated region
      $region41: #{res_layer.1} parent=5 // pred_check
        %p318 = pneg %p317
      $region42: #{res_layer.1} parent=5 // pred_check_branch
        %320 = sbr.rel (%p318) target = $region44
      $region43: #{res_layer.1} parent=5 // pred_region
        %s321 = ssub.s32 %s13, 2
        // Predicated region
        $region45: #{res_layer.1} parent=43 // pred_check
          %p322 = pneg %p110
        $region46: #{res_layer.1} parent=43 // pred_check_branch
          %324 = sbr.rel (%p322) target = $region48
        $region47: #{res_layer.1} parent=43 // pred_region
          %s325 = sand.u32 %s95, 1
          %s326 = scalar_lea.sflag [#allocation4], %s325
          %s327 = sand.u32 %s95, 1
          %s328 = smul.addr %s327, 8
          %s329 = scalar_lea.vmem [#allocation5], %s328
          %330 = dma.done %s326, 128
        $region48: #{res_layer.1} parent=43 // pred_fallthru
          _
      $region44: #{res_layer.1} parent=5 // pred_fallthru
        _
    $region6: #{res_layer.1} parent=1 // loop_footer
      %s17 = sadd.s32 1, %s13
    $region7: #{res_layer.1} parent=1 // loop_footer_branch
      %12 = sbr.rel target = $region3
    $region8: #{res_layer.1} parent=1 // loop_exit
      _
    %331 = vsyncpa [#allocation3], 1
    %s332 = scalar_lea.sflag [#allocation3], 1
    %333 = vsyncpa %s332, 1
    %334 = vsyncpa [#allocation4], 1
    %s335 = scalar_lea.sflag [#allocation4], 1
    %336 = vsyncpa %s335, 1

</llo_original>
